<compile_context>
chip_gen: v6e
topology: v6e:2x2x1
jax: 0.10.0
libtpu: 0.0.40
codegen_flags: <defaults>
</compile_context>

<pallas_src>
import math
import numpy as np
import jax
import jax.numpy as jnp
from jax.experimental import pallas as pl
from jax.experimental.pallas import tpu as pltpu  # noqa: F401


def get_rotary_matrix(context_window, embedding_dim):
    """Faithful port of the reference get_rotary_matrix (including the (i-1) quirk)."""
    R = np.zeros((context_window, embedding_dim, embedding_dim), dtype=np.float32)
    for position in range(context_window):
        for i in range(embedding_dim // 2):
            theta = 10000.0 ** (-2.0 * (i - 1) / embedding_dim)
            m_theta = position * theta
            R[position, 2 * i, 2 * i] = np.cos(m_theta)
            R[position, 2 * i, 2 * i + 1] = -np.sin(m_theta)
            R[position, 2 * i + 1, 2 * i] = np.sin(m_theta)
            R[position, 2 * i + 1, 2 * i + 1] = np.cos(m_theta)
    return jnp.asarray(R)


def rope_cos_sin(context_window, d):
    """cos/sin tables (ctx, d), channel-duplicated per 2x2 rotation block.

    Same theta table as get_rotary_matrix (including the (i-1) quirk), so that
    q @ R[p] == q * cos[p] + (q @ S) * sin[p] holds exactly.
    """
    i = np.arange(d // 2, dtype=np.float64)
    theta = 10000.0 ** (-2.0 * (i - 1.0) / d)
    ang = np.arange(context_window, dtype=np.float64)[:, None] * theta[None, :]
    cos = np.repeat(np.cos(ang), 2, axis=-1).astype(np.float32)
    sin = np.repeat(np.sin(ang), 2, axis=-1).astype(np.float32)
    return jnp.asarray(cos), jnp.asarray(sin)


def pair_swap_matrix(d):
    """Signed pair-swap S: (q @ S)[2i] = q[2i+1], (q @ S)[2i+1] = -q[2i]."""
    S = np.zeros((d, d), dtype=np.float32)
    idx = np.arange(d // 2)
    S[2 * idx + 1, 2 * idx] = 1.0
    S[2 * idx, 2 * idx + 1] = -1.0
    return jnp.asarray(S)


def precompute_head_params(wq, wk, wv, context_window, b, m):
    """Once-per-model preprocessing (hoisted out of the per-call forward path)."""
    d = wq.shape[0]
    cos_t, sin_t = rope_cos_sin(context_window, d)
    S = pair_swap_matrix(d)
    scale = 1.0 / math.sqrt(d)
    # Fused (d, 5d) projection: [ Wq^T*s | Wk^T | (Wq^T S)*s | Wk^T S | Wv^T ];
    # the 1/sqrt(d) score scale is folded into the q and qS column blocks.
    w_fused = jnp.concatenate(
        [wq.T * scale, wk.T, (wq.T @ S) * scale, wk.T @ S, wv.T], axis=1)
    # Per-row cos/sin, duplicated for the q|k halves, tiled over batch: (b*m, 2d).
    cos2 = jnp.tile(jnp.concatenate([cos_t[:m], cos_t[:m]], axis=-1), (b, 1))
    sin2 = jnp.tile(jnp.concatenate([sin_t[:m], sin_t[:m]], axis=-1), (b, 1))
    # Combined block-diagonal(batch) + causal additive mask for flattened (b*m, b*m) scores.
    row = np.arange(b * m)[:, None]
    col = np.arange(b * m)[None, :]
    allowed = ((row // m) == (col // m)) & (row >= col)
    mask_bias = jnp.asarray(np.where(allowed, 0.0, -1e30).astype(np.float32))
    return w_fused, cos2, sin2, mask_bias


def rope_attn_kernel(x_ref, w_ref, cos_ref, sin_ref, bias_ref, o_ref):
    # x_ref:    (b*m, d)      row-packed input
    # w_ref:    (d, 5d)       [ Wq^T*s | Wk^T | (Wq^T S)*s | Wk^T S | Wv^T ]
    # cos_ref:  (b*m, 2d)     per-row cos, duplicated for the q|k halves
    # sin_ref:  (b*m, 2d)
    # bias_ref: (b*m, b*m)    0 where attended, -1e30 where masked
    # o_ref:    (b*m, d)      row-packed output
    d = o_ref.shape[-1]

    # Fused projection: q | k | qS | kS | v in a single MXU pass.
    proj = jnp.dot(x_ref[...], w_ref[...],
                   preferred_element_type=jnp.float32)            # (b*m, 5d)

    # Elementwise RoPE on the packed (b*m, 2d) q|k slab (pure VPU).
    qk = proj[:, : 2 * d]
    qk_s = proj[:, 2 * d: 4 * d]
    v = proj[:, 4 * d:]
    qk_rot = qk * cos_ref[...] + qk_s * sin_ref[...]               # (b*m, 2d)
    q_rot = qk_rot[:, :d]
    k_rot = qk_rot[:, d:]

    # Flattened attention: one 2-D (b*m, b*m) score matmul (k^T folded into
    # dot_general), masked with the precomputed batch+causal bias.
    scores = jax.lax.dot_general(q_rot, k_rot, (((1,), (1,)), ((), ())),
                                 preferred_element_type=jnp.float32)
    scores = scores + bias_ref[...]

    # Numerically stable softmax; exact reciprocal on the (otherwise idle) EUP.
    s_max = jnp.max(scores, axis=-1, keepdims=True)
    p = jnp.exp(scores - s_max)
    denom = jnp.sum(p, axis=-1, keepdims=True)
    probs = p * pl.reciprocal(denom, approx=False)

    out = jnp.dot(probs, v, preferred_element_type=jnp.float32)   # (b*m, d)
    o_ref[...] = out.astype(o_ref.dtype)


@jax.jit
def rope_masked_attention_head(x, w_fused, cos2, sin2, mask_bias):
    """x: (b, m, d) f32; remaining args are precomputed by precompute_head_params."""
    b, m, d = x.shape
    x_rows = x.reshape(b * m, d)   # wrapper-side view, free in XLA
    out_rows = pl.pallas_call(
        rope_attn_kernel,
        out_shape=jax.ShapeDtypeStruct((b * m, d), jnp.float32),
    )(x_rows, w_fused, cos2, sin2, mask_bias)
    return out_rows.reshape(b, m, d)


def reference_jax(x, wq, wk, wv, R):
    """Pure-JAX reference mirroring the PyTorch forward (dropout omitted)."""
    b, m, d = x.shape
    q = x @ wq.T
    k = x @ wk.T
    v = x @ wv.T
    Rm = R[:m]
    q_rot = jnp.einsum("bpi,pij->bpj", q, Rm)
    k_rot = jnp.einsum("bpi,pij->bpj", k, Rm)
    scores = jnp.einsum("bqd,bkd->bqk", q_rot, k_rot) / math.sqrt(d)
    mask = jnp.tril(jnp.ones((m, m), dtype=bool))
    scores = jnp.where(mask[None], scores, jnp.finfo(jnp.float32).min)
    probs = jax.nn.softmax(scores, axis=-1)
    return jnp.einsum("bqk,bkd->bqd", probs, v)


if __name__ == "__main__":
    # config: d_model=32, context_window=16; inputs: batch=2, seq=8
    config = {"d_model": 32, "context_window": 16}
    b, m, d = 2, 8, config["d_model"]

    key = jax.random.PRNGKey(0)
    kx, kq, kk, kv = jax.random.split(key, 4)
    # nn.Linear(d, d, bias=False) weights: (d_out, d_in), uniform(-1/sqrt(d), 1/sqrt(d))
    bound = 1.0 / math.sqrt(d)
    wq = jax.random.uniform(kq, (d, d), jnp.float32, -bound, bound)
    wk = jax.random.uniform(kk, (d, d), jnp.float32, -bound, bound)
    wv = jax.random.uniform(kv, (d, d), jnp.float32, -bound, bound)
    x = jax.random.normal(kx, (b, m, d), jnp.float32)

    # Hoisted once-per-model precompute (fused weights, RoPE tables, mask bias).
    w_fused, cos2, sin2, mask_bias = precompute_head_params(
        wq, wk, wv, config["context_window"], b, m)

    out = rope_masked_attention_head(x, w_fused, cos2, sin2, mask_bias)
    out = jax.block_until_ready(out)

    R = get_rotary_matrix(config["context_window"], d)
    ref = reference_jax(x, wq, wk, wv, R)
    np.testing.assert_allclose(np.asarray(out), np.asarray(ref), rtol=1e-4, atol=1e-4)

    print("KERNEL_OK")
</pallas_src>

<mosaic_0001>
module attributes {stable_mosaic.version = 11 : i64} {
  func.func @rope_attn_kernel(%arg0: memref<16x32xf32, #tpu.memory_space<vmem>>, %arg1: memref<32x160xf32, #tpu.memory_space<vmem>>, %arg2: memref<16x64xf32, #tpu.memory_space<vmem>>, %arg3: memref<16x64xf32, #tpu.memory_space<vmem>>, %arg4: memref<16x16xf32, #tpu.memory_space<vmem>>, %arg5: memref<16x32xf32, #tpu.memory_space<vmem>>) attributes {dimension_semantics = [], scalar_prefetch = 0 : i64, scratch_operands = 0 : i64, tpu.core_type = #tpu.core_type<tc>} {
    %c0 = arith.constant 0 : index
    %c0_0 = arith.constant 0 : index
    %0 = vector.load %arg0[%c0, %c0_0] : memref<16x32xf32, #tpu.memory_space<vmem>>, vector<16x32xf32>
    %c0_1 = arith.constant 0 : index
    %c0_2 = arith.constant 0 : index
    %1 = vector.load %arg1[%c0_1, %c0_2] : memref<32x160xf32, #tpu.memory_space<vmem>>, vector<32x160xf32>
    %cst = arith.constant dense<0.000000e+00> : vector<16x160xf32>
    %2 = tpu.matmul %0, %1, %cst {dimension_numbers = #tpu.dot_dimension_numbers<[1], [0], [0], [1], [0, 0, 1, 1], [], []>} : vector<16x32xf32>, vector<32x160xf32>, vector<16x160xf32> -> vector<16x160xf32>
    %3 = vector.extract_strided_slice %2 {offsets = [0, 0], sizes = [16, 64], strides = [1, 1]} : vector<16x160xf32> to vector<16x64xf32>
    %4 = vector.extract_strided_slice %2 {offsets = [0, 64], sizes = [16, 64], strides = [1, 1]} : vector<16x160xf32> to vector<16x64xf32>
    %5 = vector.extract_strided_slice %2 {offsets = [0, 128], sizes = [16, 32], strides = [1, 1]} : vector<16x160xf32> to vector<16x32xf32>
    %c0_3 = arith.constant 0 : index
    %c0_4 = arith.constant 0 : index
    %6 = vector.load %arg2[%c0_3, %c0_4] : memref<16x64xf32, #tpu.memory_space<vmem>>, vector<16x64xf32>
    %7 = arith.mulf %3, %6 : vector<16x64xf32>
    %c0_5 = arith.constant 0 : index
    %c0_6 = arith.constant 0 : index
    %8 = vector.load %arg3[%c0_5, %c0_6] : memref<16x64xf32, #tpu.memory_space<vmem>>, vector<16x64xf32>
    %9 = arith.mulf %4, %8 : vector<16x64xf32>
    %10 = arith.addf %7, %9 : vector<16x64xf32>
    %11 = vector.extract_strided_slice %10 {offsets = [0, 0], sizes = [16, 32], strides = [1, 1]} : vector<16x64xf32> to vector<16x32xf32>
    %12 = vector.extract_strided_slice %10 {offsets = [0, 32], sizes = [16, 32], strides = [1, 1]} : vector<16x64xf32> to vector<16x32xf32>
    %cst_7 = arith.constant dense<0.000000e+00> : vector<16x16xf32>
    %13 = tpu.matmul %11, %12, %cst_7 {dimension_numbers = #tpu.dot_dimension_numbers<[1], [1], [0], [0], [0, 0, 1, 0], [], []>} : vector<16x32xf32>, vector<16x32xf32>, vector<16x16xf32> -> vector<16x16xf32>
    %c0_8 = arith.constant 0 : index
    %c0_9 = arith.constant 0 : index
    %14 = vector.load %arg4[%c0_8, %c0_9] : memref<16x16xf32, #tpu.memory_space<vmem>>, vector<16x16xf32>
    %15 = arith.addf %13, %14 : vector<16x16xf32>
    %cst_10 = arith.constant dense<0xFF800000> : vector<16xf32>
    %16 = vector.multi_reduction <maximumf>, %15, %cst_10 [1] : vector<16x16xf32> to vector<16xf32>
    %17 = vector.shape_cast %16 : vector<16xf32> to vector<16x1xf32>
    %18 = vector.broadcast %17 : vector<16x1xf32> to vector<16x16xf32>
    %19 = arith.subf %15, %18 : vector<16x16xf32>
    %20 = math.exp %19 : vector<16x16xf32>
    %cst_11 = arith.constant dense<0.000000e+00> : vector<16xf32>
    %21 = vector.multi_reduction <add>, %20, %cst_11 [1] : vector<16x16xf32> to vector<16xf32>
    %22 = vector.shape_cast %21 : vector<16xf32> to vector<16x1xf32>
    %23 = tpu.reciprocal %22 : vector<16x1xf32> -> vector<16x1xf32>
    %24 = vector.broadcast %23 : vector<16x1xf32> to vector<16x16xf32>
    %25 = arith.mulf %20, %24 : vector<16x16xf32>
    %cst_12 = arith.constant dense<0.000000e+00> : vector<16x32xf32>
    %26 = tpu.matmul %25, %5, %cst_12 {dimension_numbers = #tpu.dot_dimension_numbers<[1], [0], [0], [1], [0, 0, 1, 1], [], []>} : vector<16x16xf32>, vector<16x32xf32>, vector<16x32xf32> -> vector<16x32xf32>
    %c0_13 = arith.constant 0 : index
    %c0_14 = arith.constant 0 : index
    %27 = vector.load %arg5[%c0_13, %c0_14] : memref<16x32xf32, #tpu.memory_space<vmem>>, vector<16x32xf32>
    tpu.vector_store %arg5[%c0_13, %c0_14], %26 {strides = array<i32>} : memref<16x32xf32, #tpu.memory_space<vmem>>, vector<16x32xf32>,
    return
  }
}

</mosaic_0001>

<llo_original>
// kernel: rope_masked_attention_head.1
$region0: #{rope_masked_attention_head.1}
  #allocation0 [shape = 'u32[]', space=smem, size = 0x4, offset = 0x4, fixed_abs, tag = 'smem constant byte address 0x4 - core index']
  #allocation1 [shape = 'u32[144,128]{1,0:T(1,128)}', space=vmem, size = 0x12000, scoped, tag = 'internal scratch']
  %s0 = inlined_call_operand.hbm [shape: f32[16,32], index: 0, kind: input, shape index: {}]
  %s1 = inlined_call_operand.hbm [shape: f32[32,160], index: 1, kind: input, shape index: {}]
  %s2 = inlined_call_operand.hbm [shape: f32[16,64], index: 2, kind: input, shape index: {}]
  %s3 = inlined_call_operand.hbm [shape: f32[16,64], index: 3, kind: input, shape index: {}]
  %s4 = inlined_call_operand.hbm [shape: f32[16,16], index: 4, kind: input, shape index: {}]
  %s5 = inlined_call_operand.hbm [shape: f32[16,32], index: 5, kind: output, shape index: {}]
  %s6 = sld [smem:[#allocation0]]
  $region50: #{rope_masked_attention_head.1} parent=0
    _
  %s8 = ssub.s32 1, %s6
  %s9 = scalar_select 0, %s8, %s6
  $region1: #{rope_masked_attention_head.1} parent=0
    #allocation2 [shape = 'u8[8192]{0}', space=vmem, size = 0x2000, scoped, tag = 'input window, operand 0, single buffered']
    #allocation3 [shape = 's32[1]{0}', space=sflag, size = 0x4, scoped, tag = 'scoped memory for rope_masked_attention_head.1']
    #allocation4 [shape = 's32[1]{0}', space=sflag, size = 0x4, scoped, tag = 'scoped memory for rope_masked_attention_head.1']
    #allocation5 [shape = 'u8[32768]{0}', space=vmem, size = 0x8000, scoped, tag = 'input window, operand 1, single buffered']
    #allocation6 [shape = 's32[1]{0}', space=sflag, size = 0x4, scoped, tag = 'scoped memory for rope_masked_attention_head.1']
    #allocation7 [shape = 'u8[8192]{0}', space=vmem, size = 0x2000, scoped, tag = 'input window, operand 2, single buffered']
    #allocation8 [shape = 'u8[8192]{0}', space=vmem, size = 0x2000, scoped, tag = 'input window, operand 3, single buffered']
    #allocation9 [shape = 's32[1]{0}', space=sflag, size = 0x4, scoped, tag = 'scoped memory for rope_masked_attention_head.1']
    #allocation10 [shape = 'u8[8192]{0}', space=vmem, size = 0x2000, scoped, tag = 'input window, operand 4, single buffered']
    #allocation11 [shape = 'u8[8192]{0}', space=vmem, size = 0x2000, scoped, tag = 'output window, operand 0, single buffered']
    %10 = vsyncpa [#allocation3], 0
    %11 = vsyncpa [#allocation6], 0
    %12 = vsyncpa [#allocation9], 0
    %13 = vsyncpa [#allocation4], 0
    // Predicated region
    $region2: #{rope_masked_attention_head.1} parent=1 // pred_check
      _
    $region3: #{rope_masked_attention_head.1} parent=1 // pred_check_branch
      %15 = sbr.rel (0) target = $region5
    $region4: #{rope_masked_attention_head.1} parent=1 // pred_region
      %s17 = ssub.s32 256, 256
      %18 = vsyncadd [#allocation3], %s17
      %s19 = sshll.u32 [#allocation2], 4
      %s20 = int_to_ptr.vmem [resolvable:$true] %s19
      %25 = dma.hbm_to_vmem [thread:$0]  %s0, 256, %s20, [#allocation3], 128, 128, 8
    $region5: #{rope_masked_attention_head.1} parent=1 // pred_fallthru
      _
    // Predicated region
    $region6: #{rope_masked_attention_head.1} parent=1 // pred_check
      _
    $region7: #{rope_masked_attention_head.1} parent=1 // pred_check_branch
      %27 = sbr.rel (0) target = $region9
    $region8: #{rope_masked_attention_head.1} parent=1 // pred_region
      %s29 = ssub.s32 1024, 1024
      %30 = vsyncadd [#allocation6], %s29
      %s31 = sshll.u32 [#allocation5], 4
      %s32 = int_to_ptr.vmem [resolvable:$true] %s31
      %37 = dma.hbm_to_vmem [thread:$0]  %s1, 1024, %s32, [#allocation6], 256, 256, 16
    $region9: #{rope_masked_attention_head.1} parent=1 // pred_fallthru
      _
    // Predicated region
    $region10: #{rope_masked_attention_head.1} parent=1 // pred_check
      _
    $region11: #{rope_masked_attention_head.1} parent=1 // pred_check_branch
      %39 = sbr.rel (0) target = $region13
    $region12: #{rope_masked_attention_head.1} parent=1 // pred_region
      %s41 = ssub.s32 256, 256
      %42 = vsyncadd [#allocation6], %s41
      %s43 = sshll.u32 [#allocation7], 4
      %s44 = int_to_ptr.vmem [resolvable:$true] %s43
      %49 = dma.hbm_to_vmem [thread:$0]  %s2, 256, %s44, [#allocation6], 128, 128, 8
    $region13: #{rope_masked_attention_head.1} parent=1 // pred_fallthru
      _
    // Predicated region
    $region14: #{rope_masked_attention_head.1} parent=1 // pred_check
      _
    $region15: #{rope_masked_attention_head.1} parent=1 // pred_check_branch
      %51 = sbr.rel (0) target = $region17
    $region16: #{rope_masked_attention_head.1} parent=1 // pred_region
      %s53 = ssub.s32 256, 256
      %54 = vsyncadd [#allocation9], %s53
      %s55 = sshll.u32 [#allocation8], 4
      %s56 = int_to_ptr.vmem [resolvable:$true] %s55
      %61 = dma.hbm_to_vmem [thread:$0]  %s3, 256, %s56, [#allocation9], 128, 128, 8
    $region17: #{rope_masked_attention_head.1} parent=1 // pred_fallthru
      _
    // Predicated region
    $region18: #{rope_masked_attention_head.1} parent=1 // pred_check
      _
    $region19: #{rope_masked_attention_head.1} parent=1 // pred_check_branch
      %63 = sbr.rel (0) target = $region21
    $region20: #{rope_masked_attention_head.1} parent=1 // pred_region
      %s65 = ssub.s32 256, 256
      %66 = vsyncadd [#allocation9], %s65
      %s67 = sshll.u32 [#allocation10], 4
      %s68 = int_to_ptr.vmem [resolvable:$true] %s67
      %73 = dma.hbm_to_vmem [thread:$0]  %s4, 256, %s68, [#allocation9], 128, 128, 8
    $region21: #{rope_masked_attention_head.1} parent=1 // pred_fallthru
      _
    // Predicated region
    $region22: #{rope_masked_attention_head.1} parent=1 // pred_check
      _
    $region23: #{rope_masked_attention_head.1} parent=1 // pred_check_branch
      %75 = sbr.rel (0) target = $region25
    $region24: #{rope_masked_attention_head.1} parent=1 // pred_region
      %76 = dma.done [#allocation3], 256
    $region25: #{rope_masked_attention_head.1} parent=1 // pred_fallthru
      _
    // Predicated region
    $region26: #{rope_masked_attention_head.1} parent=1 // pred_check
      _
    $region27: #{rope_masked_attention_head.1} parent=1 // pred_check_branch
      %78 = sbr.rel (0) target = $region29
    $region28: #{rope_masked_attention_head.1} parent=1 // pred_region
      %79 = dma.done [#allocation6], 1024
    $region29: #{rope_masked_attention_head.1} parent=1 // pred_fallthru
      _
    // Predicated region
    $region30: #{rope_masked_attention_head.1} parent=1 // pred_check
      _
    $region31: #{rope_masked_attention_head.1} parent=1 // pred_check_branch
      %81 = sbr.rel (0) target = $region33
    $region32: #{rope_masked_attention_head.1} parent=1 // pred_region
      %82 = dma.done [#allocation6], 256
    $region33: #{rope_masked_attention_head.1} parent=1 // pred_fallthru
      _
    // Predicated region
    $region34: #{rope_masked_attention_head.1} parent=1 // pred_check
      _
    $region35: #{rope_masked_attention_head.1} parent=1 // pred_check_branch
      %84 = sbr.rel (0) target = $region37
    $region36: #{rope_masked_attention_head.1} parent=1 // pred_region
      %85 = dma.done [#allocation9], 256
    $region37: #{rope_masked_attention_head.1} parent=1 // pred_fallthru
      _
    // Predicated region
    $region38: #{rope_masked_attention_head.1} parent=1 // pred_check
      _
    $region39: #{rope_masked_attention_head.1} parent=1 // pred_check_branch
      %87 = sbr.rel (0) target = $region41
    $region40: #{rope_masked_attention_head.1} parent=1 // pred_region
      %88 = dma.done [#allocation9], 256
    $region41: #{rope_masked_attention_head.1} parent=1 // pred_fallthru
      _
    %v89 = vld [vmem:[#allocation2] sm:$0xff]
    %v90 = vld [vmem:[#allocation2 + $0x8] sm:$0xff]
    %v91 = vld [vmem:[#allocation5] sm:$0xff]
    %v92 = vld [vmem:[#allocation5 + $0x8] sm:$0xff]
    %v93 = vld [vmem:[#allocation5 + $0x10] sm:$0xff]
    %v94 = vld [vmem:[#allocation5 + $0x18] sm:$0xff]
    %v95 = vld [vmem:[#allocation5 + $0x20] sm:$0xff]
    %v96 = vld [vmem:[#allocation5 + $0x28] sm:$0xff]
    %v97 = vld [vmem:[#allocation5 + $0x30] sm:$0xff]
    %v98 = vld [vmem:[#allocation5 + $0x38] sm:$0xff]
    %vm99 = vcmask 261120
    %v101 = vsel %vm99, %v89, 0
    %v104 = vsel %vm99, %v90, 0
    %106 = vmatprep.subr.mxu0 0.0
    %107 = vmatpush1.msra.mxu0 0.0
    %108 = vmatprep.subr.mxu0 0.0
    %109 = vmatpush1.msra.mxu0 0.0
    %110 = vmatprep.subr.mxu0 0.0
    %111 = vmatpush1.msra.mxu0 0.0
    %112 = vmatprep.subr.mxu0 0.0
    %113 = vmatpush1.msra.mxu0 0.0
    %114 = vmatprep.subr.mxu0 0.0
    %115 = vmatpush1.msra.mxu0 0.0
    %116 = vmatprep.subr.mxu0 0.0
    %117 = vmatpush1.msra.mxu0 0.0
    %118 = vmatprep.subr.mxu0 0.0
    %119 = vmatpush1.msra.mxu0 0.0
    %120 = vmatprep.subr.mxu0 0.0
    %121 = vmatpush1.msra.mxu0 0.0
    %122 = vmatprep.subr.mxu0 0.0
    %123 = vmatpush1.msra.mxu0 0.0
    %124 = vmatprep.subr.mxu0 0.0
    %125 = vmatpush1.msra.mxu0 0.0
    %126 = vmatprep.subr.mxu0 0.0
    %127 = vmatpush1.msra.mxu0 0.0
    %128 = vmatprep.subr.mxu0 0.0
    %129 = vmatpush1.msra.mxu0 0.0
    %130 = vmatprep.subr.mxu0 %v98
    %131 = vmatpush1.msra.mxu0 %v97
    %132 = vmatprep.subr.mxu0 %v96
    %133 = vmatpush1.msra.mxu0 %v95
    %134 = vmatprep.subr.mxu0 %v94
    %135 = vmatpush1.msra.mxu0 %v93
    %136 = vmatprep.subr.mxu0 %v92
    %137 = vmatpush1.msra.mxu0 %v91
    %138 = vmatprep.subr.mxu0 0.0
    %139 = vmatpush2.msra.mxu0 0.0
    %140 = vmatprep.subr.mxu0 0.0
    %141 = vmatpush2.msra.mxu0 0.0
    %142 = vmatprep.subr.mxu0 0.0
    %143 = vmatpush2.msra.mxu0 0.0
    %144 = vmatprep.subr.mxu0 0.0
    %145 = vmatpush2.msra.mxu0 0.0
    %146 = vmatprep.subr.mxu0 0.0
    %147 = vmatpush2.msra.mxu0 0.0
    %148 = vmatprep.subr.mxu0 0.0
    %149 = vmatpush2.msra.mxu0 0.0
    %150 = vmatprep.subr.mxu0 0.0
    %151 = vmatpush2.msra.mxu0 0.0
    %152 = vmatprep.subr.mxu0 0.0
    %153 = vmatpush2.msra.mxu0 0.0
    %154 = vmatprep.subr.mxu0 0.0
    %155 = vmatpush2.msra.mxu0 0.0
    %156 = vmatprep.subr.mxu0 0.0
    %157 = vmatpush2.msra.mxu0 0.0
    %158 = vmatprep.subr.mxu0 0.0
    %159 = vmatpush2.msra.mxu0 0.0
    %160 = vmatprep.subr.mxu0 0.0
    %161 = vmatpush2.msra.mxu0 0.0
    %162 = vmatprep.subr.mxu0 0.0
    %163 = vmatpush2.msra.mxu0 0.0
    %164 = vmatprep.subr.mxu0 0.0
    %165 = vmatpush2.msra.mxu0 0.0
    %166 = vmatprep.subr.mxu0 0.0
    %167 = vmatpush2.msra.mxu0 0.0
    %168 = vmatprep.subr.mxu0 0.0
    %169 = vmatpush2.msra.mxu0 0.0
    %170 = vmatprep.mubr.f32.mxu0 0.0
    %171 = vmatmul.mubr.f32.gmra.mxu0 %v101
    %v172 = vpop.f32.mrf.mxu0
    %v173 = vadd.f32 0.0, %v172
    %v174 = vpop.f32.mrf.mxu0
    %v175 = vadd.f32 0.0, %v174
    %176 = vmatprep.mubr.f32.mxu0 0.0
    %177 = vmatmul.mubr.f32.gmra.mxu0 %v104
    %v178 = vpop.f32.mrf.mxu0
    %v179 = vadd.f32 0.0, %v178
    %v180 = vpop.f32.mrf.mxu0
    %v181 = vadd.f32 0.0, %v180
    %182 = vdwg.mxu0
    %v183 = vld [vmem:[#allocation7] sm:$0xff]
    %v184 = vld [vmem:[#allocation7 + $0x8] sm:$0xff]
    %v185 = vmul.f32 %v173, %v183
    %v186 = vmul.f32 %v179, %v184
    %v187 = vld [vmem:[#allocation8] sm:$0xff]
    %v188 = vld [vmem:[#allocation8 + $0x8] sm:$0xff]
    %191 = vrot.lane.b32.xlu0 %v187, 64
    %v192 = vpop.permute.xlu0 %191
    %193 = vrot.lane.b32.xlu0 %v188, 64
    %v194 = vpop.permute.xlu0 %193
    %v197 = vmul.f32 %v173, %v192
    %v198 = vmul.f32 %v179, %v194
    %201 = vrot.lane.b32.xlu0 %v197, 64
    %v202 = vpop.permute.xlu0 %201
    %203 = vrot.lane.b32.xlu0 %v198, 64
    %v204 = vpop.permute.xlu0 %203
    %v207 = vadd.f32 %v185, %v202
    %v208 = vadd.f32 %v186, %v204
    %v209 = vld [vmem:[#allocation10] sm:$0xff]
    %v210 = vld [vmem:[#allocation10 + $0x8] sm:$0xff]
    %213 = vrot.lane.b32.xlu0 %v207, 96
    %v214 = vpop.permute.xlu0 %213
    %215 = vrot.lane.b32.xlu0 %v208, 96
    %v216 = vpop.permute.xlu0 %215
    %v217 = vsel %vm99, %v207, 0
    %v219 = vsel %vm99, %v208, 0
    %v221 = vsel %vm99, %v214, 0
    %v223 = vsel %vm99, %v216, 0
    %225 = vmatprep.subr.mxu0 0.0
    %226 = vmatpush1.xpose.msra.mxu0 0.0
    %227 = vmatprep.subr.mxu0 0.0
    %228 = vmatpush1.xpose.msra.mxu0 0.0
    %229 = vmatprep.subr.mxu0 0.0
    %230 = vmatpush1.xpose.msra.mxu0 0.0
    %231 = vmatprep.subr.mxu0 0.0
    %232 = vmatpush1.xpose.msra.mxu0 0.0
    %233 = vmatprep.subr.mxu0 0.0
    %234 = vmatpush1.xpose.msra.mxu0 0.0
    %235 = vmatprep.subr.mxu0 0.0
    %236 = vmatpush1.xpose.msra.mxu0 0.0
    %237 = vmatprep.subr.mxu0 0.0
    %238 = vmatpush1.xpose.msra.mxu0 0.0
    %239 = vmatprep.subr.mxu0 0.0
    %240 = vmatpush1.xpose.msra.mxu0 0.0
    %241 = vmatprep.subr.mxu0 0.0
    %242 = vmatpush1.xpose.msra.mxu0 0.0
    %243 = vmatprep.subr.mxu0 0.0
    %244 = vmatpush1.xpose.msra.mxu0 0.0
    %245 = vmatprep.subr.mxu0 0.0
    %246 = vmatpush1.xpose.msra.mxu0 0.0
    %247 = vmatprep.subr.mxu0 0.0
    %248 = vmatpush1.xpose.msra.mxu0 0.0
    %249 = vmatprep.subr.mxu0 0.0
    %250 = vmatpush1.xpose.msra.mxu0 0.0
    %251 = vmatprep.subr.mxu0 0.0
    %252 = vmatpush1.xpose.msra.mxu0 0.0
    %253 = vmatprep.subr.mxu0 0.0
    %254 = vmatpush1.xpose.msra.mxu0 %v223
    %255 = vmatprep.subr.mxu0 0.0
    %256 = vmatpush1.xpose.msra.mxu0 %v221
    %257 = vmatprep.subr.mxu0 0.0
    %258 = vmatpush2.xpose.msra.mxu0 0.0
    %259 = vmatprep.subr.mxu0 0.0
    %260 = vmatpush2.xpose.msra.mxu0 0.0
    %261 = vmatprep.subr.mxu0 0.0
    %262 = vmatpush2.xpose.msra.mxu0 0.0
    %263 = vmatprep.subr.mxu0 0.0
    %264 = vmatpush2.xpose.msra.mxu0 0.0
    %265 = vmatprep.subr.mxu0 0.0
    %266 = vmatpush2.xpose.msra.mxu0 0.0
    %267 = vmatprep.subr.mxu0 0.0
    %268 = vmatpush2.xpose.msra.mxu0 0.0
    %269 = vmatprep.subr.mxu0 0.0
    %270 = vmatpush2.xpose.msra.mxu0 0.0
    %271 = vmatprep.subr.mxu0 0.0
    %272 = vmatpush2.xpose.msra.mxu0 0.0
    %273 = vmatprep.subr.mxu0 0.0
    %274 = vmatpush2.xpose.msra.mxu0 0.0
    %275 = vmatprep.subr.mxu0 0.0
    %276 = vmatpush2.xpose.msra.mxu0 0.0
    %277 = vmatprep.subr.mxu0 0.0
    %278 = vmatpush2.xpose.msra.mxu0 0.0
    %279 = vmatprep.subr.mxu0 0.0
    %280 = vmatpush2.xpose.msra.mxu0 0.0
    %281 = vmatprep.subr.mxu0 0.0
    %282 = vmatpush2.xpose.msra.mxu0 0.0
    %283 = vmatprep.subr.mxu0 0.0
    %284 = vmatpush2.xpose.msra.mxu0 0.0
    %285 = vmatprep.subr.mxu0 0.0
    %286 = vmatpush2.xpose.msra.mxu0 0.0
    %287 = vmatprep.subr.mxu0 0.0
    %288 = vmatpush2.xpose.msra.mxu0 0.0
    %289 = vmatprep.mubr.f32.mxu0 0.0
    %290 = vmatmul.mubr.f32.gmra.mxu0 %v217
    %v291 = vpop.f32.mrf.mxu0
    %v292 = vadd.f32 %v209, %v291
    %v293 = vpop.f32.mrf.mxu0
    %294 = vmatprep.mubr.f32.mxu0 0.0
    %295 = vmatmul.mubr.f32.gmra.mxu0 %v219
    %v296 = vpop.f32.mrf.mxu0
    %v297 = vadd.f32 %v210, %v296
    %v298 = vpop.f32.mrf.mxu0
    %299 = vdwg.mxu0
    %vm300 = vcmask 130048
    %v301 = vsel %vm300, %v292, -inf
    %302 = vmax.xlane.f32.xlu0 %v301
    %v303 = vpop.xlane.xlu0 %302
    %v304 = vsel %vm300, %v297, -inf
    %305 = vmax.xlane.f32.xlu0 %v304
    %v306 = vpop.xlane.xlu0 %305
    %v307 = vsub.f32 %v292, %v303
    %v308 = vsub.f32 %v297, %v306
    %v309 = vmul.f32 %v307, 1.442695
    %v310 = vpow.pop %v309
    %v311 = vmul.f32 %v308, 1.442695
    %v312 = vpow.pop %v311
    %v313 = vsel %vm300, %v310, 0.0
    %314 = vadd.xlane.f32.xlu0 %v313
    %v315 = vpop.xlane.xlu0 %314
    %v316 = vsel %vm300, %v312, 0.0
    %317 = vadd.xlane.f32.xlu0 %v316
    %v318 = vpop.xlane.xlu0 %317
    %v319 = vrcp.pop %v315
    %v320 = vrcp.pop %v318
    %v321 = vmul.f32 %v310, %v319
    %v322 = vmul.f32 %v312, %v320
    %v324 = vsel %vm300, %v321, 0
    %v327 = vsel %vm300, %v322, 0
    %329 = vmatprep.subr.mxu0 0.0
    %330 = vmatpush1.msra.mxu0 0.0
    %331 = vmatprep.subr.mxu0 0.0
    %332 = vmatpush1.msra.mxu0 0.0
    %333 = vmatprep.subr.mxu0 0.0
    %334 = vmatpush1.msra.mxu0 0.0
    %335 = vmatprep.subr.mxu0 0.0
    %336 = vmatpush1.msra.mxu0 0.0
    %337 = vmatprep.subr.mxu0 0.0
    %338 = vmatpush1.msra.mxu0 0.0
    %339 = vmatprep.subr.mxu0 0.0
    %340 = vmatpush1.msra.mxu0 0.0
    %341 = vmatprep.subr.mxu0 0.0
    %342 = vmatpush1.msra.mxu0 0.0
    %343 = vmatprep.subr.mxu0 0.0
    %344 = vmatpush1.msra.mxu0 0.0
    %345 = vmatprep.subr.mxu0 0.0
    %346 = vmatpush1.msra.mxu0 0.0
    %347 = vmatprep.subr.mxu0 0.0
    %348 = vmatpush1.msra.mxu0 0.0
    %349 = vmatprep.subr.mxu0 0.0
    %350 = vmatpush1.msra.mxu0 0.0
    %351 = vmatprep.subr.mxu0 0.0
    %352 = vmatpush1.msra.mxu0 0.0
    %353 = vmatprep.subr.mxu0 0.0
    %354 = vmatpush1.msra.mxu0 0.0
    %355 = vmatprep.subr.mxu0 0.0
    %356 = vmatpush1.msra.mxu0 0.0
    %357 = vmatprep.subr.mxu0 0.0
    %358 = vmatpush1.msra.mxu0 %v181
    %359 = vmatprep.subr.mxu0 0.0
    %360 = vmatpush1.msra.mxu0 %v175
    %361 = vmatprep.subr.mxu0 0.0
    %362 = vmatpush2.msra.mxu0 0.0
    %363 = vmatprep.subr.mxu0 0.0
    %364 = vmatpush2.msra.mxu0 0.0
    %365 = vmatprep.subr.mxu0 0.0
    %366 = vmatpush2.msra.mxu0 0.0
    %367 = vmatprep.subr.mxu0 0.0
    %368 = vmatpush2.msra.mxu0 0.0
    %369 = vmatprep.subr.mxu0 0.0
    %370 = vmatpush2.msra.mxu0 0.0
    %371 = vmatprep.subr.mxu0 0.0
    %372 = vmatpush2.msra.mxu0 0.0
    %373 = vmatprep.subr.mxu0 0.0
    %374 = vmatpush2.msra.mxu0 0.0
    %375 = vmatprep.subr.mxu0 0.0
    %376 = vmatpush2.msra.mxu0 0.0
    %377 = vmatprep.subr.mxu0 0.0
    %378 = vmatpush2.msra.mxu0 0.0
    %379 = vmatprep.subr.mxu0 0.0
    %380 = vmatpush2.msra.mxu0 0.0
    %381 = vmatprep.subr.mxu0 0.0
    %382 = vmatpush2.msra.mxu0 0.0
    %383 = vmatprep.subr.mxu0 0.0
    %384 = vmatpush2.msra.mxu0 0.0
    %385 = vmatprep.subr.mxu0 0.0
    %386 = vmatpush2.msra.mxu0 0.0
    %387 = vmatprep.subr.mxu0 0.0
    %388 = vmatpush2.msra.mxu0 0.0
    %389 = vmatprep.subr.mxu0 0.0
    %390 = vmatpush2.msra.mxu0 0.0
    %391 = vmatprep.subr.mxu0 0.0
    %392 = vmatpush2.msra.mxu0 0.0
    %393 = vmatprep.mubr.f32.mxu0 0.0
    %394 = vmatmul.mubr.f32.gmra.mxu0 %v324
    %v395 = vpop.f32.mrf.mxu0
    %v396 = vadd.f32 0.0, %v395
    %v397 = vpop.f32.mrf.mxu0
    %398 = vmatprep.mubr.f32.mxu0 0.0
    %399 = vmatmul.mubr.f32.gmra.mxu0 %v327
    %v400 = vpop.f32.mrf.mxu0
    %v401 = vadd.f32 0.0, %v400
    %v402 = vpop.f32.mrf.mxu0
    %403 = vdwg.mxu0
    %404 = vst.msk [vmem:[#allocation11] sm:$0xff] %vm99, %v396
    %405 = vst.msk [vmem:[#allocation11 + $0x8] sm:$0xff] %vm99, %v401
    // Predicated region
    $region42: #{rope_masked_attention_head.1} parent=1 // pred_check
      _
    $region43: #{rope_masked_attention_head.1} parent=1 // pred_check_branch
      %407 = sbr.rel (0) target = $region45
    $region44: #{rope_masked_attention_head.1} parent=1 // pred_region
      %s409 = ssub.s32 256, 256
      %410 = vsyncadd [#allocation4], %s409
      %s411 = sshll.u32 [#allocation11], 4
      %s412 = int_to_ptr.vmem [resolvable:$true] %s411
      %417 = dma.vmem_to_hbm [thread:$0]  %s412, 256, %s5, [#allocation4], 128, 128, 8
    $region45: #{rope_masked_attention_head.1} parent=1 // pred_fallthru
      _
    // Predicated region
    $region46: #{rope_masked_attention_head.1} parent=1 // pred_check
      _
    $region47: #{rope_masked_attention_head.1} parent=1 // pred_check_branch
      %419 = sbr.rel (0) target = $region49
    $region48: #{rope_masked_attention_head.1} parent=1 // pred_region
      %420 = dma.done [#allocation4], 256
    $region49: #{rope_masked_attention_head.1} parent=1 // pred_fallthru
      _
    %421 = vsyncpa [#allocation3], 1
    %422 = vsyncpa [#allocation6], 1
    %423 = vsyncpa [#allocation9], 1
    %424 = vsyncpa [#allocation4], 1

</llo_original>
